<compile_context>
chip_gen: v7x
topology: tpu7x:2x2x1
jax: 0.10.0
libtpu: 0.0.40
codegen_flags: <defaults>
</compile_context>

<pallas_src>
import functools

import jax
import jax.numpy as jnp
from jax.experimental import pallas as pl
from jax.experimental.pallas import tpu as pltpu


def _round_up(x, m):
    return ((x + m - 1) // m) * m


# --------------------------------------------------------------------------- #
# Pallas kernel
# --------------------------------------------------------------------------- #
def fire_kernel(x_ref, wsr_ref, bsq_ref, we_ref, be_ref, mask_ref, out_ref,
                *, S, W):
    """One block (a whole group of images) of the fire module.

    x_ref    : (Cin, cols)          activations, cols = images_per_block * H*W
    wsr_ref  : (S + Cout, Cin)      [squeeze(padded) ; residual] 1x1 weights
    bsq_ref  : (S, 1)               squeeze bias (f32; pad rows are zero)
    we_ref   : (Cout, 9*S)          fused expand1(centre tap) + expand2 weights
    be_ref   : (Cout, 1)            expand + residual bias (f32)
    mask_ref : (9, cols)            {0,1} border-validity mask per 3x3 tap (f32)
    out_ref  : (Cout, cols)
    """
    mm = we_ref.dtype
    cols = x_ref.shape[-1]

    # ---- fused squeeze + residual 1x1 convs: ONE MXU matmul, all columns ----
    y = jnp.dot(wsr_ref[...], x_ref[...], preferred_element_type=jnp.float32)

    # Park the residual branch in the VMEM-resident output block (frees vregs).
    out_ref[...] = y[S:, :]

    # Squeeze bias + ReLU (f32 on the VPU).
    sq = jnp.maximum(y[:S, :] + bsq_ref[...], 0.0)              # (S, cols) f32

    # ---- im2col: 9 static XLU rolls + precomputed border masks --------------
    # Taps are cast to the matmul dtype as they are produced; S is padded to 16
    # rows host-side so each tap is a full sublane tile and the concat is
    # tile-aligned.
    taps = []
    for dy in range(3):
        for dx in range(3):
            t = dy * 3 + dx
            d = (dy - 1) * W + (dx - 1)                         # flat shift
            if d == 0:
                tap = sq.astype(mm)
            else:
                rolled = pltpu.roll(sq, shift=(-d) % cols, axis=1)
                tap = (rolled * mask_ref[t:t + 1, :]).astype(mm)
            taps.append(tap)
    im2col = jnp.concatenate(taps, axis=0)                      # (9*S, cols)

    # ---- fused expand1 + expand2: ONE MXU matmul with K = 9*S ---------------
    e = jnp.dot(we_ref[...], im2col, preferred_element_type=jnp.float32)

    # ---- bias (incl. folded residual bias) + residual add + ReLU ------------
    out_ref[...] = jnp.maximum(e + be_ref[...] + out_ref[...],
                               0.0).astype(out_ref.dtype)


# --------------------------------------------------------------------------- #
# Wrapper
# --------------------------------------------------------------------------- #
def _make_tap_masks(H, W, n_images):
    """(9, n_images*H*W) f32 {0,1} border-validity masks for the 3x3 taps."""
    HW = H * W
    p = jnp.arange(HW, dtype=jnp.int32)
    h = p // W
    w = p % W
    rows = []
    for dy in range(3):
        for dx in range(3):
            oy, ox = dy - 1, dx - 1
            rows.append((h + oy >= 0) & (h + oy < H) &
                        (w + ox >= 0) & (w + ox < W))
    m = jnp.stack(rows, axis=0).astype(jnp.float32)             # (9, HW)
    return jnp.tile(m, (1, n_images))                           # (9, n*HW)


def fire_module_forward(x_nchw, fused_params, *, use_bf16=True,
                        images_per_block=None):
    """x_nchw: (N, Cin, H, W) f32 -> (N, e1x1+e3x3, H, W) f32."""
    wsr, bsq, we, be = fused_params
    N, Cin, H, W = x_nchw.shape
    HW = H * W
    Cout = we.shape[0]
    S_pad = we.shape[1] // 9

    if images_per_block is None:
        # Whole batch per grid step at these sizes (amortise per-step overhead).
        # TODO(synk): on v7x pick images_per_block = N // 2 so the "parallel"
        # grid has >= 2 steps and both TensorCores get work.
        images_per_block = N
    assert N % images_per_block == 0
    bcols = images_per_block * HW                 # block boundary = image boundary
    n_blocks = N // images_per_block

    mm_dtype = jnp.bfloat16 if use_bf16 else jnp.float32

    # Channels-major flat layout: (Cin, N*H*W) so batch*spatial rides the lane
    # axis -> lane-dense loads/stores and wide MXU columns.
    x2 = jnp.transpose(x_nchw, (1, 0, 2, 3)).reshape(Cin, N * HW).astype(mm_dtype)

    mask = _make_tap_masks(H, W, images_per_block)              # (9, bcols) f32

    kernel = functools.partial(fire_kernel, S=S_pad, W=W)
    out2 = pl.pallas_call(
        kernel,
        out_shape=jax.ShapeDtypeStruct((Cout, N * HW), jnp.float32),
        grid=(n_blocks,),
        in_specs=[
            pl.BlockSpec((Cin, bcols), lambda i: (0, i)),          # activations
            pl.BlockSpec((S_pad + Cout, Cin), lambda i: (0, 0)),   # resident weights
            pl.BlockSpec((S_pad, 1), lambda i: (0, 0)),
            pl.BlockSpec((Cout, 9 * S_pad), lambda i: (0, 0)),
            pl.BlockSpec((Cout, 1), lambda i: (0, 0)),
            pl.BlockSpec((9, bcols), lambda i: (0, 0)),            # tap masks
        ],
        out_specs=pl.BlockSpec((Cout, bcols), lambda i: (0, i)),
        compiler_params=pltpu.CompilerParams(
            dimension_semantics=("parallel",),
            vmem_limit_bytes=48 * 1024 * 1024,   # safe on v7x (64 MiB physical)
        ),
    )(x2, wsr.astype(mm_dtype), bsq.astype(jnp.float32),
      we.astype(mm_dtype), be.astype(jnp.float32), mask)
    # TODO(synk): for production fire sizes (Cin~512, HW~3k, W not a lane-tile
    # multiple) add a spatial (H) grid axis with a 1-row halo, re-validate the
    # tap masks for non-128-multiple HW, and consider a bf16 output dtype to
    # halve the writeback on v7x.
    return out2.reshape(Cout, N, H, W).transpose(1, 0, 2, 3)


# --------------------------------------------------------------------------- #
# Parameter setup: raw module params + BN folding / weight fusion (host side)
# --------------------------------------------------------------------------- #
def init_module_params(key, in_channels, s1x1, e1x1, e3x3, is_conv):
    keys = iter(jax.random.split(key, 24))

    def bn_stats(c):
        return (jax.random.uniform(next(keys), (c,), minval=0.5, maxval=1.5),
                0.1 * jax.random.normal(next(keys), (c,)),
                0.1 * jax.random.normal(next(keys), (c,)),
                jax.random.uniform(next(keys), (c,), minval=0.5, maxval=1.5))

    def conv_w(shape, scale):
        return scale * jax.random.normal(next(keys), shape)

    p = {}
    p['squeeze'] = (conv_w((s1x1, in_channels), 0.3),
                    0.1 * jax.random.normal(next(keys), (s1x1,)),
                    bn_stats(s1x1))
    p['expand1'] = (conv_w((e1x1, s1x1), 0.3),
                    0.1 * jax.random.normal(next(keys), (e1x1,)),
                    bn_stats(e1x1))
    p['expand2'] = (conv_w((e3x3, s1x1, 3, 3), 0.2),
                    0.1 * jax.random.normal(next(keys), (e3x3,)),
                    bn_stats(e3x3))
    if is_conv:
        cout = e1x1 + e3x3
        p['conv'] = (conv_w((cout, in_channels), 0.3),
                     0.1 * jax.random.normal(next(keys), (cout,)),
                     bn_stats(cout))
    else:
        p['conv'] = None
    return jax.tree_util.tree_map(lambda a: a.astype(jnp.float32), p)


def _bn_affine(bn, eps=1e-5):
    gamma, beta, mean, var = bn
    scale = gamma / jnp.sqrt(var + eps)
    return scale, beta - mean * scale


def fuse_params(p, eps=1e-5, s_pad_to=16):
    """Fold eval-mode BatchNorm into the conv weights and build the fused
    weight matrices consumed by the kernel (squeeze rows padded to a bf16
    sublane tile so every im2col tap is tile-aligned)."""
    w_sq, b_sq, bn_sq = p['squeeze']          # (S, Cin), (S,)
    w_e1, b_e1, bn_e1 = p['expand1']          # (E1, S), (E1,)
    w_e3, b_e3, bn_e3 = p['expand2']          # (E3, S, 3, 3), (E3,)
    S, Cin = w_sq.shape
    E1, E3 = w_e1.shape[0], w_e3.shape[0]
    Cout = E1 + E3
    S_pad = _round_up(S, s_pad_to)

    sc, sh = _bn_affine(bn_sq, eps)
    w_sq_f, b_sq_f = w_sq * sc[:, None], b_sq * sc + sh
    sc, sh = _bn_affine(bn_e1, eps)
    w_e1_f, b_e1_f = w_e1 * sc[:, None], b_e1 * sc + sh
    sc, sh = _bn_affine(bn_e3, eps)
    w_e3_f, b_e3_f = w_e3 * sc[:, None, None, None], b_e3 * sc + sh

    if p['conv'] is not None:
        w_r, b_r, bn_r = p['conv']            # (Cout, Cin), (Cout,)
        sc, sh = _bn_affine(bn_r, eps)
        w_r_f, b_r_f = w_r * sc[:, None], b_r * sc + sh
    else:                                     # identity residual
        assert Cin == Cout, "identity residual needs matching channel counts"
        w_r_f = jnp.eye(Cout, dtype=jnp.float32)
        b_r_f = jnp.zeros((Cout,), jnp.float32)

    # [squeeze (padded to S_pad rows) ; residual] fused 1x1 weight / bias.
    wsr = jnp.zeros((S_pad + Cout, Cin), jnp.float32)
    wsr = wsr.at[:S, :].set(w_sq_f)
    wsr = wsr.at[S_pad:, :].set(w_r_f)
    bsq = jnp.zeros((S_pad, 1), jnp.float32).at[:S, 0].set(b_sq_f)

    # Fused expand weight: tap t = dy*3+dx occupies columns [t*S_pad, t*S_pad+S).
    # expand1 (1x1) lives on the centre tap (t=4).  Residual bias folded into be.
    we = jnp.zeros((Cout, 9 * S_pad), jnp.float32)
    we = we.at[:E1, 4 * S_pad:4 * S_pad + S].set(w_e1_f)
    for dy in range(3):
        for dx in range(3):
            t = dy * 3 + dx
            we = we.at[E1:, t * S_pad:t * S_pad + S].set(w_e3_f[:, :, dy, dx])
    be = (jnp.concatenate([b_e1_f, b_e3_f], axis=0) + b_r_f)[:, None]

    f32 = lambda a: a.astype(jnp.float32)
    return f32(wsr), f32(bsq), f32(we), f32(be)


# --------------------------------------------------------------------------- #
# Pure-JAX reference (faithful fire_module forward, no folding)
# --------------------------------------------------------------------------- #
def ref_fire_module(x, p, eps=1e-5):
    prec = jax.lax.Precision.HIGHEST

    def bn(y, bnp):
        g, b, m, v = bnp
        s = g / jnp.sqrt(v + eps)
        return (y - m[None, :, None, None]) * s[None, :, None, None] \
            + b[None, :, None, None]

    def conv1x1(y, w, b):
        return jnp.einsum('oc,nchw->nohw', w, y, precision=prec) \
            + b[None, :, None, None]

    def conv3x3(y, w, b):
        _, _, hh, ww = y.shape
        yp = jnp.pad(y, ((0, 0), (0, 0), (1, 1), (1, 1)))
        out = 0.0
        for dy in range(3):
            for dx in range(3):
                out = out + jnp.einsum('oc,nchw->nohw', w[:, :, dy, dx],
                                       yp[:, :, dy:dy + hh, dx:dx + ww],
                                       precision=prec)
        return out + b[None, :, None, None]

    w_sq, b_sq, bn_sq = p['squeeze']
    sq = jax.nn.relu(bn(conv1x1(x, w_sq, b_sq), bn_sq))
    w1, b1, bn1 = p['expand1']
    e1 = bn(conv1x1(sq, w1, b1), bn1)
    w3, b3, bn3 = p['expand2']
    e3 = bn(conv3x3(sq, w3, b3), bn3)
    out = jnp.concatenate([e1, e3], axis=1)
    if p['conv'] is not None:
        wr, br, bnr = p['conv']
        res = bn(conv1x1(x, wr, br), bnr)
    else:
        res = x
    return jax.nn.relu(out + res)


# --------------------------------------------------------------------------- #
if __name__ == "__main__":
    # fire_module(in_channels=4, s1x1=8, e1x1=16, e3x3=16, is_conv=True)
    N, Cin, H, W = 2, 4, 16, 16
    s1x1, e1x1, e3x3 = 8, 16, 16
    Cout = e1x1 + e3x3

    key = jax.random.PRNGKey(0)
    kx, kp = jax.random.split(key)
    x = jax.random.normal(kx, (N, Cin, H, W), jnp.float32)
    params = init_module_params(kp, Cin, s1x1, e1x1, e3x3, is_conv=True)
    fused = fuse_params(params)

    ref = ref_fire_module(x, params)

    # f32-operand path (MXU default precision; tolerance covers that).
    out_f32 = jax.block_until_ready(fire_module_forward(x, fused, use_bf16=False))
    assert out_f32.shape == (N, Cout, H, W)
    assert jnp.allclose(out_f32, ref, atol=5e-2, rtol=5e-2), "f32 kernel mismatch"

    # bf16 MXU-operand path (default; recommended on all generations incl. v5e).
    # Bias / ReLU / accumulation stay in f32.
    out_bf16 = jax.block_until_ready(fire_module_forward(x, fused, use_bf16=True))
    assert out_bf16.shape == (N, Cout, H, W)
    assert jnp.allclose(out_bf16, ref, atol=1e-1, rtol=5e-2), "bf16 kernel mismatch"

    print("KERNEL_OK")
</pallas_src>

<mosaic_0001>
module attributes {stable_mosaic.version = 11 : i64} {
  func.func @fire_kernel(%arg0: i32, %arg1: memref<4x512xf32, #tpu.memory_space<vmem>>, %arg2: memref<48x4xf32, #tpu.memory_space<vmem>>, %arg3: memref<16x1xf32, #tpu.memory_space<vmem>>, %arg4: memref<32x144xf32, #tpu.memory_space<vmem>>, %arg5: memref<32x1xf32, #tpu.memory_space<vmem>>, %arg6: memref<9x512xf32, #tpu.memory_space<vmem>>, %arg7: memref<32x512xf32, #tpu.memory_space<vmem>>) attributes {dimension_semantics = [#tpu.dimension_semantics<parallel>], iteration_bounds = array<i64: 1>, scalar_prefetch = 0 : i64, scratch_operands = 0 : i64, tpu.core_type = #tpu.core_type<tc>, window_params = [{transform_indices = @transform_0, window_bounds = array<i64: 4, 512>}, {pipeline_mode = #tpu.pipeline_mode<synchronous>, transform_indices = @transform_1, window_bounds = array<i64: 48, 4>}, {pipeline_mode = #tpu.pipeline_mode<synchronous>, transform_indices = @transform_2, window_bounds = array<i64: 16, 1>}, {pipeline_mode = #tpu.pipeline_mode<synchronous>, transform_indices = @transform_3, window_bounds = array<i64: 32, 144>}, {pipeline_mode = #tpu.pipeline_mode<synchronous>, transform_indices = @transform_4, window_bounds = array<i64: 32, 1>}, {pipeline_mode = #tpu.pipeline_mode<synchronous>, transform_indices = @transform_5, window_bounds = array<i64: 9, 512>}, {transform_indices = @transform_6, window_bounds = array<i64: 32, 512>}]} {
    %c0 = arith.constant 0 : index
    %c0_0 = arith.constant 0 : index
    %0 = vector.load %arg2[%c0, %c0_0] : memref<48x4xf32, #tpu.memory_space<vmem>>, vector<48x4xf32>
    %c0_1 = arith.constant 0 : index
    %c0_2 = arith.constant 0 : index
    %1 = vector.load %arg1[%c0_1, %c0_2] : memref<4x512xf32, #tpu.memory_space<vmem>>, vector<4x512xf32>
    %cst = arith.constant dense<0.000000e+00> : vector<48x512xf32>
    %2 = tpu.matmul %0, %1, %cst {dimension_numbers = #tpu.dot_dimension_numbers<[1], [0], [0], [1], [0, 0, 1, 1], [], []>} : vector<48x4xf32>, vector<4x512xf32>, vector<48x512xf32> -> vector<48x512xf32>
    %3 = vector.extract_strided_slice %2 {offsets = [16, 0], sizes = [32, 512], strides = [1, 1]} : vector<48x512xf32> to vector<32x512xf32>
    %c0_3 = arith.constant 0 : index
    %c0_4 = arith.constant 0 : index
    %4 = vector.load %arg7[%c0_3, %c0_4] : memref<32x512xf32, #tpu.memory_space<vmem>>, vector<32x512xf32>
    tpu.vector_store %arg7[%c0_3, %c0_4], %3 {strides = array<i32>} : memref<32x512xf32, #tpu.memory_space<vmem>>, vector<32x512xf32>,
    %5 = vector.extract_strided_slice %2 {offsets = [0, 0], sizes = [16, 512], strides = [1, 1]} : vector<48x512xf32> to vector<16x512xf32>
    %c0_5 = arith.constant 0 : index
    %c0_6 = arith.constant 0 : index
    %6 = vector.load %arg3[%c0_5, %c0_6] : memref<16x1xf32, #tpu.memory_space<vmem>>, vector<16x1xf32>
    %7 = vector.broadcast %6 : vector<16x1xf32> to vector<16x512xf32>
    %8 = arith.addf %5, %7 : vector<16x512xf32>
    %cst_7 = arith.constant 0.000000e+00 : f32
    %9 = vector.broadcast %cst_7 : f32 to vector<16x512xf32>
    %10 = arith.maximumf %8, %9 : vector<16x512xf32>
    %c17_i32 = arith.constant 17 : i32
    %11 = tpu.dynamic_rotate %10 by %c17_i32 dim 1 : vector<16x512xf32>, i32 -> vector<16x512xf32>
    %c0_8 = arith.constant 0 : index
    %c0_9 = arith.constant 0 : index
    %12 = vector.load %arg6[%c0_8, %c0_9] : memref<9x512xf32, #tpu.memory_space<vmem>>, vector<1x512xf32>
    %13 = vector.broadcast %12 : vector<1x512xf32> to vector<16x512xf32>
    %14 = arith.mulf %11, %13 : vector<16x512xf32>
    %c16_i32 = arith.constant 16 : i32
    %15 = tpu.dynamic_rotate %10 by %c16_i32 dim 1 : vector<16x512xf32>, i32 -> vector<16x512xf32>
    %c1 = arith.constant 1 : index
    %c0_10 = arith.constant 0 : index
    %16 = vector.load %arg6[%c1, %c0_10] : memref<9x512xf32, #tpu.memory_space<vmem>>, vector<1x512xf32>
    %17 = vector.broadcast %16 : vector<1x512xf32> to vector<16x512xf32>
    %18 = arith.mulf %15, %17 : vector<16x512xf32>
    %c15_i32 = arith.constant 15 : i32
    %19 = tpu.dynamic_rotate %10 by %c15_i32 dim 1 : vector<16x512xf32>, i32 -> vector<16x512xf32>
    %c2 = arith.constant 2 : index
    %c0_11 = arith.constant 0 : index
    %20 = vector.load %arg6[%c2, %c0_11] : memref<9x512xf32, #tpu.memory_space<vmem>>, vector<1x512xf32>
    %21 = vector.broadcast %20 : vector<1x512xf32> to vector<16x512xf32>
    %22 = arith.mulf %19, %21 : vector<16x512xf32>
    %c1_i32 = arith.constant 1 : i32
    %23 = tpu.dynamic_rotate %10 by %c1_i32 dim 1 : vector<16x512xf32>, i32 -> vector<16x512xf32>
    %c3 = arith.constant 3 : index
    %c0_12 = arith.constant 0 : index
    %24 = vector.load %arg6[%c3, %c0_12] : memref<9x512xf32, #tpu.memory_space<vmem>>, vector<1x512xf32>
    %25 = vector.broadcast %24 : vector<1x512xf32> to vector<16x512xf32>
    %26 = arith.mulf %23, %25 : vector<16x512xf32>
    %c511_i32 = arith.constant 511 : i32
    %27 = tpu.dynamic_rotate %10 by %c511_i32 dim 1 : vector<16x512xf32>, i32 -> vector<16x512xf32>
    %c5 = arith.constant 5 : index
    %c0_13 = arith.constant 0 : index
    %28 = vector.load %arg6[%c5, %c0_13] : memref<9x512xf32, #tpu.memory_space<vmem>>, vector<1x512xf32>
    %29 = vector.broadcast %28 : vector<1x512xf32> to vector<16x512xf32>
    %30 = arith.mulf %27, %29 : vector<16x512xf32>
    %c497_i32 = arith.constant 497 : i32
    %31 = tpu.dynamic_rotate %10 by %c497_i32 dim 1 : vector<16x512xf32>, i32 -> vector<16x512xf32>
    %c6 = arith.constant 6 : index
    %c0_14 = arith.constant 0 : index
    %32 = vector.load %arg6[%c6, %c0_14] : memref<9x512xf32, #tpu.memory_space<vmem>>, vector<1x512xf32>
    %33 = vector.broadcast %32 : vector<1x512xf32> to vector<16x512xf32>
    %34 = arith.mulf %31, %33 : vector<16x512xf32>
    %c496_i32 = arith.constant 496 : i32
    %35 = tpu.dynamic_rotate %10 by %c496_i32 dim 1 : vector<16x512xf32>, i32 -> vector<16x512xf32>
    %c7 = arith.constant 7 : index
    %c0_15 = arith.constant 0 : index
    %36 = vector.load %arg6[%c7, %c0_15] : memref<9x512xf32, #tpu.memory_space<vmem>>, vector<1x512xf32>
    %37 = vector.broadcast %36 : vector<1x512xf32> to vector<16x512xf32>
    %38 = arith.mulf %35, %37 : vector<16x512xf32>
    %c495_i32 = arith.constant 495 : i32
    %39 = tpu.dynamic_rotate %10 by %c495_i32 dim 1 : vector<16x512xf32>, i32 -> vector<16x512xf32>
    %c8 = arith.constant 8 : index
    %c0_16 = arith.constant 0 : index
    %40 = vector.load %arg6[%c8, %c0_16] : memref<9x512xf32, #tpu.memory_space<vmem>>, vector<1x512xf32>
    %41 = vector.broadcast %40 : vector<1x512xf32> to vector<16x512xf32>
    %42 = arith.mulf %39, %41 : vector<16x512xf32>
    %43 = tpu.concatenate %14, %18, %22, %26, %10, %30, %34, %38, %42 in 0 : vector<16x512xf32>, vector<16x512xf32>, vector<16x512xf32>, vector<16x512xf32>, vector<16x512xf32>, vector<16x512xf32>, vector<16x512xf32>, vector<16x512xf32>, vector<16x512xf32> -> vector<144x512xf32>
    %c0_17 = arith.constant 0 : index
    %c0_18 = arith.constant 0 : index
    %44 = vector.load %arg4[%c0_17, %c0_18] : memref<32x144xf32, #tpu.memory_space<vmem>>, vector<32x144xf32>
    %cst_19 = arith.constant dense<0.000000e+00> : vector<32x512xf32>
    %45 = tpu.matmul %44, %43, %cst_19 {dimension_numbers = #tpu.dot_dimension_numbers<[1], [0], [0], [1], [0, 0, 1, 1], [], []>} : vector<32x144xf32>, vector<144x512xf32>, vector<32x512xf32> -> vector<32x512xf32>
    %c0_20 = arith.constant 0 : index
    %c0_21 = arith.constant 0 : index
    %46 = vector.load %arg5[%c0_20, %c0_21] : memref<32x1xf32, #tpu.memory_space<vmem>>, vector<32x1xf32>
    %47 = vector.broadcast %46 : vector<32x1xf32> to vector<32x512xf32>
    %48 = arith.addf %45, %47 : vector<32x512xf32>
    %c0_22 = arith.constant 0 : index
    %c0_23 = arith.constant 0 : index
    %49 = vector.load %arg7[%c0_22, %c0_23] : memref<32x512xf32, #tpu.memory_space<vmem>>, vector<32x512xf32>
    %50 = arith.addf %48, %49 : vector<32x512xf32>
    %cst_24 = arith.constant 0.000000e+00 : f32
    %51 = vector.broadcast %cst_24 : f32 to vector<32x512xf32>
    %52 = arith.maximumf %50, %51 : vector<32x512xf32>
    %c0_25 = arith.constant 0 : index
    %c0_26 = arith.constant 0 : index
    %53 = vector.load %arg7[%c0_25, %c0_26] : memref<32x512xf32, #tpu.memory_space<vmem>>, vector<32x512xf32>
    tpu.vector_store %arg7[%c0_25, %c0_26], %52 {strides = array<i32>} : memref<32x512xf32, #tpu.memory_space<vmem>>, vector<32x512xf32>,
    return
  }
  func.func @transform_0(%arg0: i32) -> (i32, i32) {
    %c0_i32 = arith.constant 0 : i32
    %c0_i32_0 = arith.constant 0 : i32
    return %c0_i32, %arg0 : i32, i32
  }
  func.func @transform_1(%arg0: i32) -> (i32, i32) {
    %c0_i32 = arith.constant 0 : i32
    %c0_i32_0 = arith.constant 0 : i32
    %c0_i32_1 = arith.constant 0 : i32
    return %c0_i32, %c0_i32_0 : i32, i32
  }
  func.func @transform_2(%arg0: i32) -> (i32, i32) {
    %c0_i32 = arith.constant 0 : i32
    %c0_i32_0 = arith.constant 0 : i32
    %c0_i32_1 = arith.constant 0 : i32
    return %c0_i32, %c0_i32_0 : i32, i32
  }
  func.func @transform_3(%arg0: i32) -> (i32, i32) {
    %c0_i32 = arith.constant 0 : i32
    %c0_i32_0 = arith.constant 0 : i32
    %c0_i32_1 = arith.constant 0 : i32
    return %c0_i32, %c0_i32_0 : i32, i32
  }
  func.func @transform_4(%arg0: i32) -> (i32, i32) {
    %c0_i32 = arith.constant 0 : i32
    %c0_i32_0 = arith.constant 0 : i32
    %c0_i32_1 = arith.constant 0 : i32
    return %c0_i32, %c0_i32_0 : i32, i32
  }
  func.func @transform_5(%arg0: i32) -> (i32, i32) {
    %c0_i32 = arith.constant 0 : i32
    %c0_i32_0 = arith.constant 0 : i32
    %c0_i32_1 = arith.constant 0 : i32
    return %c0_i32, %c0_i32_0 : i32, i32
  }
  func.func @transform_6(%arg0: i32) -> (i32, i32) {
    %c0_i32 = arith.constant 0 : i32
    %c0_i32_0 = arith.constant 0 : i32
    return %c0_i32, %arg0 : i32, i32
  }
}

</mosaic_0001>

<llo_original>
// kernel: tpu_custom_call.1
$region0: #{tpu_custom_call.1}
  #allocation0 [shape = 'u32[]', space=smem, size = 0x4, offset = 0x4, fixed_abs, tag = 'smem constant byte address 0x4 - core index']
  #allocation1 [shape = 'u32[144,128]{1,0:T(1,128)}', space=vmem, size = 0x12000, scoped, tag = 'internal scratch']
  %s0 = inlined_call_operand.vmem [shape: f32[4,512], index: 0, kind: input, shape index: {}]
  %s1 = inlined_call_operand.vmem [shape: f32[48,4], index: 1, kind: input, shape index: {}]
  %s2 = inlined_call_operand.vmem [shape: f32[16,1], index: 2, kind: input, shape index: {}]
  %s3 = inlined_call_operand.vmem [shape: f32[32,144], index: 3, kind: input, shape index: {}]
  %s4 = inlined_call_operand.vmem [shape: f32[32,1], index: 4, kind: input, shape index: {}]
  %s5 = inlined_call_operand.hbm [shape: f32[9,512], index: 5, kind: input, shape index: {}]
  %s6 = inlined_call_operand.hbm [shape: f32[32,512], index: 6, kind: output, shape index: {}]
  %s7 = sld [smem:[#allocation0]]
  $region38: #{tpu_custom_call.1} parent=0
    _
  %s9 = ssub.s32 1, %s7
  %s10 = scalar_select 0, %s9, %s7
  $region1: #{tpu_custom_call.1} parent=0
    #allocation2 [shape = 'u8[32768]{0}', space=vmem, size = 0x8000, scoped, tag = 'input window, operand 5, single buffered']
    #allocation3 [shape = 's32[1]{0}', space=sflag, size = 0x4, scoped, tag = 'scoped memory for tpu_custom_call.1']
    #allocation4 [shape = 's32[1]{0}', space=sflag, size = 0x4, scoped, tag = 'scoped memory for tpu_custom_call.1']
    #allocation5 [shape = 'u8[65536]{0}', space=vmem, size = 0x10000, scoped, tag = 'output window, operand 0, single buffered']
    %11 = vsyncpa [#allocation3], 0
    %12 = vsyncpa [#allocation4], 0
    // Predicated region
    $region2: #{tpu_custom_call.1} parent=1 // pred_check
      _
    $region3: #{tpu_custom_call.1} parent=1 // pred_check_branch
      %14 = sbr.rel (0) target = $region5
    $region4: #{tpu_custom_call.1} parent=1 // pred_region
      _
    $region5: #{tpu_custom_call.1} parent=1 // pred_fallthru
      _
    // Predicated region
    $region6: #{tpu_custom_call.1} parent=1 // pred_check
      _
    $region7: #{tpu_custom_call.1} parent=1 // pred_check_branch
      %16 = sbr.rel (0) target = $region9
    $region8: #{tpu_custom_call.1} parent=1 // pred_region
      _
    $region9: #{tpu_custom_call.1} parent=1 // pred_fallthru
      _
    // Predicated region
    $region10: #{tpu_custom_call.1} parent=1 // pred_check
      _
    $region11: #{tpu_custom_call.1} parent=1 // pred_check_branch
      %18 = sbr.rel (0) target = $region13
    $region12: #{tpu_custom_call.1} parent=1 // pred_region
      _
    $region13: #{tpu_custom_call.1} parent=1 // pred_fallthru
      _
    // Predicated region
    $region14: #{tpu_custom_call.1} parent=1 // pred_check
      _
    $region15: #{tpu_custom_call.1} parent=1 // pred_check_branch
      %20 = sbr.rel (0) target = $region17
    $region16: #{tpu_custom_call.1} parent=1 // pred_region
      _
    $region17: #{tpu_custom_call.1} parent=1 // pred_fallthru
      _
    // Predicated region
    $region18: #{tpu_custom_call.1} parent=1 // pred_check
      _
    $region19: #{tpu_custom_call.1} parent=1 // pred_check_branch
      %22 = sbr.rel (0) target = $region21
    $region20: #{tpu_custom_call.1} parent=1 // pred_region
      _
    $region21: #{tpu_custom_call.1} parent=1 // pred_fallthru
      _
    // Predicated region
    $region22: #{tpu_custom_call.1} parent=1 // pred_check
      _
    $region23: #{tpu_custom_call.1} parent=1 // pred_check_branch
      %24 = sbr.rel (0) target = $region25
    $region24: #{tpu_custom_call.1} parent=1 // pred_region
      %s26 = ssub.s32 1024, 1024
      %27 = vsyncadd [#allocation3], %s26
      %s28 = sshll.u32 [#allocation2], 4
      %s29 = int_to_ptr.vmem [resolvable:$true] %s28
      %34 = dma.hbm_to_vmem [thread:$0]  %s5, 1024, %s29, [#allocation3], 512, 512, 32
    $region25: #{tpu_custom_call.1} parent=1 // pred_fallthru
      _
    // Predicated region
    $region26: #{tpu_custom_call.1} parent=1 // pred_check
      _
    $region27: #{tpu_custom_call.1} parent=1 // pred_check_branch
      %36 = sbr.rel (0) target = $region29
    $region28: #{tpu_custom_call.1} parent=1 // pred_region
      %37 = dma.done [#allocation3], 1024
    $region29: #{tpu_custom_call.1} parent=1 // pred_fallthru
      _
    %v38 = vld [vmem:[%s1] sm:$0xff]
    %v39 = vld [vmem:[%s1 + $0x8] sm:$0xff]
    %v40 = vld [vmem:[%s1 + $0x10] sm:$0xff]
    %v41 = vld [vmem:[%s1 + $0x18] sm:$0xff]
    %v42 = vld [vmem:[%s1 + $0x20] sm:$0xff]
    %v43 = vld [vmem:[%s1 + $0x28] sm:$0xff]
    %v44 = vld [vmem:[%s0] sm:$0xff]
    %v45 = vld [vmem:[%s0 + $0x8] sm:$0xff]
    %v48 = vcombine.high %v44, %v44
    %v49 = vcombine.high %v45, %v45
    %vm50 = vcmask 31744
    %v52 = vsel %vm50, %v38, 0
    %v55 = vsel %vm50, %v39, 0
    %v58 = vsel %vm50, %v40, 0
    %v61 = vsel %vm50, %v41, 0
    %v64 = vsel %vm50, %v42, 0
    %v67 = vsel %vm50, %v43, 0
    %vm69 = vcmask 1043456
    %v70 = vsel %vm69, %v44, 0
    %v72 = vsel %vm69, %v48, 0
    %v74 = vsel %vm69, %v45, 0
    %v76 = vsel %vm69, %v49, 0
    %78 = vmatprep.subr.mxu0 %v72
    %79 = vmatpush1.msra.mxu0 %v70
    %80 = vmatprep.subr.mxu0 0.0
    %81 = vmatpush1.msra.mxu0 0.0
    %82 = vmatprep.subr.mxu0 0.0
    %83 = vmatpush1.msra.mxu0 0.0
    %84 = vmatprep.subr.mxu0 0.0
    %85 = vmatpush1.msra.mxu0 0.0
    %86 = vmatprep.subr.mxu0 0.0
    %87 = vmatpush1.msra.mxu0 0.0
    %88 = vmatprep.subr.mxu0 0.0
    %89 = vmatpush1.msra.mxu0 0.0
    %90 = vmatprep.subr.mxu0 0.0
    %91 = vmatpush1.msra.mxu0 0.0
    %92 = vmatprep.subr.mxu0 0.0
    %93 = vmatpush1.msra.mxu0 0.0
    %94 = vmatprep.subr.mxu0 0.0
    %95 = vmatpush1.msra.mxu0 0.0
    %96 = vmatprep.subr.mxu0 0.0
    %97 = vmatpush1.msra.mxu0 0.0
    %98 = vmatprep.subr.mxu0 0.0
    %99 = vmatpush1.msra.mxu0 0.0
    %100 = vmatprep.subr.mxu0 0.0
    %101 = vmatpush1.msra.mxu0 0.0
    %102 = vmatprep.subr.mxu0 0.0
    %103 = vmatpush1.msra.mxu0 0.0
    %104 = vmatprep.subr.mxu0 0.0
    %105 = vmatpush1.msra.mxu0 0.0
    %106 = vmatprep.subr.mxu0 0.0
    %107 = vmatpush1.msra.mxu0 0.0
    %108 = vmatprep.subr.mxu0 0.0
    %109 = vmatpush1.msra.mxu0 0.0
    %110 = vmatprep.subr.mxu0 0.0
    %111 = vmatpush1.msra.mxu0 0.0
    %112 = vmatprep.subr.mxu0 0.0
    %113 = vmatpush1.msra.mxu0 0.0
    %114 = vmatprep.subr.mxu0 0.0
    %115 = vmatpush1.msra.mxu0 0.0
    %116 = vmatprep.subr.mxu0 0.0
    %117 = vmatpush1.msra.mxu0 0.0
    %118 = vmatprep.subr.mxu0 0.0
    %119 = vmatpush1.msra.mxu0 0.0
    %120 = vmatprep.subr.mxu0 0.0
    %121 = vmatpush1.msra.mxu0 0.0
    %122 = vmatprep.subr.mxu0 0.0
    %123 = vmatpush1.msra.mxu0 0.0
    %124 = vmatprep.subr.mxu0 0.0
    %125 = vmatpush1.msra.mxu0 0.0
    %126 = vmatprep.subr.mxu0 0.0
    %127 = vmatpush1.msra.mxu0 0.0
    %128 = vmatprep.subr.mxu0 0.0
    %129 = vmatpush1.msra.mxu0 0.0
    %130 = vmatprep.subr.mxu0 0.0
    %131 = vmatpush1.msra.mxu0 0.0
    %132 = vmatprep.subr.mxu0 0.0
    %133 = vmatpush1.msra.mxu0 0.0
    %134 = vmatprep.subr.mxu0 0.0
    %135 = vmatpush1.msra.mxu0 0.0
    %136 = vmatprep.subr.mxu0 0.0
    %137 = vmatpush1.msra.mxu0 0.0
    %138 = vmatprep.subr.mxu0 0.0
    %139 = vmatpush1.msra.mxu0 0.0
    %140 = vmatprep.subr.mxu0 0.0
    %141 = vmatpush1.msra.mxu0 0.0
    %142 = vmatprep.mubr.f32.mxu0 0.0
    %143 = vmatmul.mubr.f32.gmra.mrb[0].mxu0 %v52
    %v144 = vpop.f32.mrb[0].mxu0
    %v145 = vadd.f32 0.0, %v144
    %v146 = vpop.f32.mrb[0].mxu0
    %v147 = vadd.f32 0.0, %v146
    %148 = vmatprep.mubr.f32.mxu0 0.0
    %149 = vmatmul.mubr.f32.gmra.mrb[0].mxu0 %v55
    %v150 = vpop.f32.mrb[0].mxu0
    %v151 = vadd.f32 0.0, %v150
    %v152 = vpop.f32.mrb[0].mxu0
    %v153 = vadd.f32 0.0, %v152
    %154 = vmatprep.mubr.f32.mxu0 0.0
    %155 = vmatmul.mubr.f32.gmra.mrb[0].mxu0 %v58
    %v156 = vpop.f32.mrb[0].mxu0
    %v157 = vadd.f32 0.0, %v156
    %v158 = vpop.f32.mrb[0].mxu0
    %v159 = vadd.f32 0.0, %v158
    %160 = vmatprep.mubr.f32.mxu0 0.0
    %161 = vmatmul.mubr.f32.gmra.mrb[0].mxu0 %v61
    %v162 = vpop.f32.mrb[0].mxu0
    %v163 = vadd.f32 0.0, %v162
    %v164 = vpop.f32.mrb[0].mxu0
    %v165 = vadd.f32 0.0, %v164
    %166 = vmatprep.mubr.f32.mxu0 0.0
    %167 = vmatmul.mubr.f32.gmra.mrb[0].mxu0 %v64
    %v168 = vpop.f32.mrb[0].mxu0
    %v169 = vadd.f32 0.0, %v168
    %v170 = vpop.f32.mrb[0].mxu0
    %v171 = vadd.f32 0.0, %v170
    %172 = vmatprep.mubr.f32.mxu0 0.0
    %173 = vmatmul.mubr.f32.gmra.mrb[0].mxu0 %v67
    %v174 = vpop.f32.mrb[0].mxu0
    %v175 = vadd.f32 0.0, %v174
    %v176 = vpop.f32.mrb[0].mxu0
    %v177 = vadd.f32 0.0, %v176
    %178 = vdwg.mxu0
    %179 = vmatprep.subr.mxu0 %v76
    %180 = vmatpush1.msra.mxu0 %v74
    %181 = vmatprep.subr.mxu0 0.0
    %182 = vmatpush1.msra.mxu0 0.0
    %183 = vmatprep.subr.mxu0 0.0
    %184 = vmatpush1.msra.mxu0 0.0
    %185 = vmatprep.subr.mxu0 0.0
    %186 = vmatpush1.msra.mxu0 0.0
    %187 = vmatprep.subr.mxu0 0.0
    %188 = vmatpush1.msra.mxu0 0.0
    %189 = vmatprep.subr.mxu0 0.0
    %190 = vmatpush1.msra.mxu0 0.0
    %191 = vmatprep.subr.mxu0 0.0
    %192 = vmatpush1.msra.mxu0 0.0
    %193 = vmatprep.subr.mxu0 0.0
    %194 = vmatpush1.msra.mxu0 0.0
    %195 = vmatprep.subr.mxu0 0.0
    %196 = vmatpush1.msra.mxu0 0.0
    %197 = vmatprep.subr.mxu0 0.0
    %198 = vmatpush1.msra.mxu0 0.0
    %199 = vmatprep.subr.mxu0 0.0
    %200 = vmatpush1.msra.mxu0 0.0
    %201 = vmatprep.subr.mxu0 0.0
    %202 = vmatpush1.msra.mxu0 0.0
    %203 = vmatprep.subr.mxu0 0.0
    %204 = vmatpush1.msra.mxu0 0.0
    %205 = vmatprep.subr.mxu0 0.0
    %206 = vmatpush1.msra.mxu0 0.0
    %207 = vmatprep.subr.mxu0 0.0
    %208 = vmatpush1.msra.mxu0 0.0
    %209 = vmatprep.subr.mxu0 0.0
    %210 = vmatpush1.msra.mxu0 0.0
    %211 = vmatprep.subr.mxu0 0.0
    %212 = vmatpush1.msra.mxu0 0.0
    %213 = vmatprep.subr.mxu0 0.0
    %214 = vmatpush1.msra.mxu0 0.0
    %215 = vmatprep.subr.mxu0 0.0
    %216 = vmatpush1.msra.mxu0 0.0
    %217 = vmatprep.subr.mxu0 0.0
    %218 = vmatpush1.msra.mxu0 0.0
    %219 = vmatprep.subr.mxu0 0.0
    %220 = vmatpush1.msra.mxu0 0.0
    %221 = vmatprep.subr.mxu0 0.0
    %222 = vmatpush1.msra.mxu0 0.0
    %223 = vmatprep.subr.mxu0 0.0
    %224 = vmatpush1.msra.mxu0 0.0
    %225 = vmatprep.subr.mxu0 0.0
    %226 = vmatpush1.msra.mxu0 0.0
    %227 = vmatprep.subr.mxu0 0.0
    %228 = vmatpush1.msra.mxu0 0.0
    %229 = vmatprep.subr.mxu0 0.0
    %230 = vmatpush1.msra.mxu0 0.0
    %231 = vmatprep.subr.mxu0 0.0
    %232 = vmatpush1.msra.mxu0 0.0
    %233 = vmatprep.subr.mxu0 0.0
    %234 = vmatpush1.msra.mxu0 0.0
    %235 = vmatprep.subr.mxu0 0.0
    %236 = vmatpush1.msra.mxu0 0.0
    %237 = vmatprep.subr.mxu0 0.0
    %238 = vmatpush1.msra.mxu0 0.0
    %239 = vmatprep.subr.mxu0 0.0
    %240 = vmatpush1.msra.mxu0 0.0
    %241 = vmatprep.subr.mxu0 0.0
    %242 = vmatpush1.msra.mxu0 0.0
    %243 = vmatprep.mubr.f32.mxu0 0.0
    %244 = vmatmul.mubr.f32.gmra.mrb[0].mxu0 %v52
    %v245 = vpop.f32.mrb[0].mxu0
    %v246 = vadd.f32 0.0, %v245
    %v247 = vpop.f32.mrb[0].mxu0
    %v248 = vadd.f32 0.0, %v247
    %249 = vmatprep.mubr.f32.mxu0 0.0
    %250 = vmatmul.mubr.f32.gmra.mrb[0].mxu0 %v55
    %v251 = vpop.f32.mrb[0].mxu0
    %v252 = vadd.f32 0.0, %v251
    %v253 = vpop.f32.mrb[0].mxu0
    %v254 = vadd.f32 0.0, %v253
    %255 = vmatprep.mubr.f32.mxu0 0.0
    %256 = vmatmul.mubr.f32.gmra.mrb[0].mxu0 %v58
    %v257 = vpop.f32.mrb[0].mxu0
    %v258 = vadd.f32 0.0, %v257
    %v259 = vpop.f32.mrb[0].mxu0
    %v260 = vadd.f32 0.0, %v259
    %261 = vmatprep.mubr.f32.mxu0 0.0
    %262 = vmatmul.mubr.f32.gmra.mrb[0].mxu0 %v61
    %v263 = vpop.f32.mrb[0].mxu0
    %v264 = vadd.f32 0.0, %v263
    %v265 = vpop.f32.mrb[0].mxu0
    %v266 = vadd.f32 0.0, %v265
    %267 = vmatprep.mubr.f32.mxu0 0.0
    %268 = vmatmul.mubr.f32.gmra.mrb[0].mxu0 %v64
    %v269 = vpop.f32.mrb[0].mxu0
    %v270 = vadd.f32 0.0, %v269
    %v271 = vpop.f32.mrb[0].mxu0
    %v272 = vadd.f32 0.0, %v271
    %273 = vmatprep.mubr.f32.mxu0 0.0
    %274 = vmatmul.mubr.f32.gmra.mrb[0].mxu0 %v67
    %v275 = vpop.f32.mrb[0].mxu0
    %v276 = vadd.f32 0.0, %v275
    %v277 = vpop.f32.mrb[0].mxu0
    %v278 = vadd.f32 0.0, %v277
    %279 = vdwg.mxu0
    %280 = vst [vmem:[#allocation5] sm:$0xff] %v157
    %281 = vst [vmem:[#allocation5 + $0x8] sm:$0xff] %v159
    %282 = vst [vmem:[#allocation5 + $0x10] sm:$0xff] %v258
    %283 = vst [vmem:[#allocation5 + $0x18] sm:$0xff] %v260
    %284 = vst [vmem:[#allocation5 + $0x20] sm:$0xff] %v163
    %285 = vst [vmem:[#allocation5 + $0x28] sm:$0xff] %v165
    %286 = vst [vmem:[#allocation5 + $0x30] sm:$0xff] %v264
    %287 = vst [vmem:[#allocation5 + $0x38] sm:$0xff] %v266
    %288 = vst [vmem:[#allocation5 + $0x40] sm:$0xff] %v169
    %289 = vst [vmem:[#allocation5 + $0x48] sm:$0xff] %v171
    %290 = vst [vmem:[#allocation5 + $0x50] sm:$0xff] %v270
    %291 = vst [vmem:[#allocation5 + $0x58] sm:$0xff] %v272
    %292 = vst [vmem:[#allocation5 + $0x60] sm:$0xff] %v175
    %293 = vst [vmem:[#allocation5 + $0x68] sm:$0xff] %v177
    %294 = vst [vmem:[#allocation5 + $0x70] sm:$0xff] %v276
    %295 = vst [vmem:[#allocation5 + $0x78] sm:$0xff] %v278
    %v296 = vld [vmem:[%s2] sm:$0xff]
    %v297 = vld [vmem:[%s2 + $0x8] sm:$0xff]
    %299 = vset.pattern.permute.xlu0 0
    %300 = vperm.xlu0 %299, %v296
    %v301 = vpop.permute.xlu0 %300
    %304 = vset.pattern.permute.xlu0 0
    %305 = vperm.xlu0 %304, %v297
    %v306 = vpop.permute.xlu0 %305
    %v308 = vadd.f32 %v145, %v301
    %v309 = vadd.f32 %v147, %v301
    %v310 = vadd.f32 %v246, %v301
    %v311 = vadd.f32 %v248, %v301
    %v312 = vadd.f32 %v151, %v306
    %v313 = vadd.f32 %v153, %v306
    %v314 = vadd.f32 %v252, %v306
    %v315 = vadd.f32 %v254, %v306
    %v316 = vmax.f32 %v308, 0.0
    %v317 = vmax.f32 %v309, 0.0
    %v318 = vmax.f32 %v310, 0.0
    %v319 = vmax.f32 %v311, 0.0
    %v320 = vmax.f32 %v312, 0.0
    %v321 = vmax.f32 %v313, 0.0
    %v322 = vmax.f32 %v314, 0.0
    %v323 = vmax.f32 %v315, 0.0
    %324 = vrot.lane.b32.xlu0 %v316, 17
    %v325 = vpop.permute.xlu0 %324
    %326 = vrot.lane.b32.xlu0 %v320, 17
    %v327 = vpop.permute.xlu0 %326
    %328 = vrot.lane.b32.xlu0 %v317, 17
    %v329 = vpop.permute.xlu0 %328
    %330 = vrot.lane.b32.xlu0 %v321, 17
    %v331 = vpop.permute.xlu0 %330
    %332 = vrot.lane.b32.xlu0 %v318, 17
    %v333 = vpop.permute.xlu0 %332
    %334 = vrot.lane.b32.xlu0 %v322, 17
    %v335 = vpop.permute.xlu0 %334
    %336 = vrot.lane.b32.xlu0 %v319, 17
    %v337 = vpop.permute.xlu0 %336
    %338 = vrot.lane.b32.xlu0 %v323, 17
    %v339 = vpop.permute.xlu0 %338
    %v340 = vlaneseq
    %v341 = vand.u32 %v340, 127
    %vm342 = vcmp.lt.s32.totalorder %v341, 17
    %v343 = vsel %vm342, %v333, %v337
    %v344 = vsel %vm342, %v335, %v339
    %v345 = vsel %vm342, %v329, %v333
    %v346 = vsel %vm342, %v331, %v335
    %v347 = vsel %vm342, %v325, %v329
    %v348 = vsel %vm342, %v327, %v331
    %v349 = vsel %vm342, %v337, %v325
    %v350 = vsel %vm342, %v339, %v327
    %v351 = vld [vmem:[#allocation2] ss:$8 sm:$0xf]
    %v353 = vlaneseq
    %v354 = vshrl.u32 %v353, 7
    %v355 = vsub.s32 0, %v354
    %v356 = vrot.slane %v351, %v355
    %v357 = vlaneseq
    %v358 = vshrl.u32 %v357, 7
    %v359 = vsub.s32 1, %v358
    %v360 = vrot.slane %v351, %v359
    %v361 = vlaneseq
    %v362 = vshrl.u32 %v361, 7
    %v363 = vsub.s32 2, %v362
    %v364 = vrot.slane %v351, %v363
    %v365 = vlaneseq
    %v366 = vshrl.u32 %v365, 7
    %v367 = vsub.s32 3, %v366
    %v368 = vrot.slane %v351, %v367
    %v373 = vmul.f32 %v349, %v356
    %v374 = vmul.f32 %v347, %v360
    %v375 = vmul.f32 %v345, %v364
    %v376 = vmul.f32 %v343, %v368
    %v377 = vmul.f32 %v350, %v356
    %v378 = vmul.f32 %v348, %v360
    %v379 = vmul.f32 %v346, %v364
    %v380 = vmul.f32 %v344, %v368
    %381 = vrot.lane.b32.xlu0 %v316, 16
    %v382 = vpop.permute.xlu0 %381
    %383 = vrot.lane.b32.xlu0 %v320, 16
    %v384 = vpop.permute.xlu0 %383
    %385 = vrot.lane.b32.xlu0 %v317, 16
    %v386 = vpop.permute.xlu0 %385
    %387 = vrot.lane.b32.xlu0 %v321, 16
    %v388 = vpop.permute.xlu0 %387
    %389 = vrot.lane.b32.xlu0 %v318, 16
    %v390 = vpop.permute.xlu0 %389
    %391 = vrot.lane.b32.xlu0 %v322, 16
    %v392 = vpop.permute.xlu0 %391
    %393 = vrot.lane.b32.xlu0 %v319, 16
    %v394 = vpop.permute.xlu0 %393
    %395 = vrot.lane.b32.xlu0 %v323, 16
    %v396 = vpop.permute.xlu0 %395
    %vm397 = vcmp.lt.s32.totalorder %v341, 16
    %v398 = vsel %vm397, %v390, %v394
    %v399 = vsel %vm397, %v392, %v396
    %v400 = vsel %vm397, %v386, %v390
    %v401 = vsel %vm397, %v388, %v392
    %v402 = vsel %vm397, %v382, %v386
    %v403 = vsel %vm397, %v384, %v388
    %v404 = vsel %vm397, %v394, %v382
    %v405 = vsel %vm397, %v396, %v384
    %s406 = scalar_lea.vmem [#allocation2], 1
    %v407 = vld [vmem:[%s406] ss:$8 sm:$0xf]
    %v409 = vlaneseq
    %v410 = vshrl.u32 %v409, 7
    %v411 = vsub.s32 0, %v410
    %v412 = vrot.slane %v407, %v411
    %v413 = vlaneseq
    %v414 = vshrl.u32 %v413, 7
    %v415 = vsub.s32 1, %v414
    %v416 = vrot.slane %v407, %v415
    %v417 = vlaneseq
    %v418 = vshrl.u32 %v417, 7
    %v419 = vsub.s32 2, %v418
    %v420 = vrot.slane %v407, %v419
    %v421 = vlaneseq
    %v422 = vshrl.u32 %v421, 7
    %v423 = vsub.s32 3, %v422
    %v424 = vrot.slane %v407, %v423
    %v429 = vmul.f32 %v404, %v412
    %v430 = vmul.f32 %v402, %v416
    %v431 = vmul.f32 %v400, %v420
    %v432 = vmul.f32 %v398, %v424
    %v433 = vmul.f32 %v405, %v412
    %v434 = vmul.f32 %v403, %v416
    %v435 = vmul.f32 %v401, %v420
    %v436 = vmul.f32 %v399, %v424
    %437 = vrot.lane.b32.xlu0 %v316, 15
    %v438 = vpop.permute.xlu0 %437
    %439 = vrot.lane.b32.xlu0 %v320, 15
    %v440 = vpop.permute.xlu0 %439
    %441 = vrot.lane.b32.xlu0 %v317, 15
    %v442 = vpop.permute.xlu0 %441
    %443 = vrot.lane.b32.xlu0 %v321, 15
    %v444 = vpop.permute.xlu0 %443
    %445 = vrot.lane.b32.xlu0 %v318, 15
    %v446 = vpop.permute.xlu0 %445
    %447 = vrot.lane.b32.xlu0 %v322, 15
    %v448 = vpop.permute.xlu0 %447
    %449 = vrot.lane.b32.xlu0 %v319, 15
    %v450 = vpop.permute.xlu0 %449
    %451 = vrot.lane.b32.xlu0 %v323, 15
    %v452 = vpop.permute.xlu0 %451
    %vm453 = vcmp.lt.s32.totalorder %v341, 15
    %v454 = vsel %vm453, %v446, %v450
    %v455 = vsel %vm453, %v448, %v452
    %v456 = vsel %vm453, %v442, %v446
    %v457 = vsel %vm453, %v444, %v448
    %v458 = vsel %vm453, %v438, %v442
    %v459 = vsel %vm453, %v440, %v444
    %v460 = vsel %vm453, %v450, %v438
    %v461 = vsel %vm453, %v452, %v440
    %s462 = scalar_lea.vmem [#allocation2], 2
    %v463 = vld [vmem:[%s462] ss:$8 sm:$0xf]
    %v465 = vlaneseq
    %v466 = vshrl.u32 %v465, 7
    %v467 = vsub.s32 0, %v466
    %v468 = vrot.slane %v463, %v467
    %v469 = vlaneseq
    %v470 = vshrl.u32 %v469, 7
    %v471 = vsub.s32 1, %v470
    %v472 = vrot.slane %v463, %v471
    %v473 = vlaneseq
    %v474 = vshrl.u32 %v473, 7
    %v475 = vsub.s32 2, %v474
    %v476 = vrot.slane %v463, %v475
    %v477 = vlaneseq
    %v478 = vshrl.u32 %v477, 7
    %v479 = vsub.s32 3, %v478
    %v480 = vrot.slane %v463, %v479
    %v485 = vmul.f32 %v460, %v468
    %v486 = vmul.f32 %v458, %v472
    %v487 = vmul.f32 %v456, %v476
    %v488 = vmul.f32 %v454, %v480
    %v489 = vmul.f32 %v461, %v468
    %v490 = vmul.f32 %v459, %v472
    %v491 = vmul.f32 %v457, %v476
    %v492 = vmul.f32 %v455, %v480
    %493 = vrot.lane.b32.xlu0 %v316, 1
    %v494 = vpop.permute.xlu0 %493
    %495 = vrot.lane.b32.xlu0 %v320, 1
    %v496 = vpop.permute.xlu0 %495
    %497 = vrot.lane.b32.xlu0 %v317, 1
    %v498 = vpop.permute.xlu0 %497
    %499 = vrot.lane.b32.xlu0 %v321, 1
    %v500 = vpop.permute.xlu0 %499
    %501 = vrot.lane.b32.xlu0 %v318, 1
    %v502 = vpop.permute.xlu0 %501
    %503 = vrot.lane.b32.xlu0 %v322, 1
    %v504 = vpop.permute.xlu0 %503
    %505 = vrot.lane.b32.xlu0 %v319, 1
    %v506 = vpop.permute.xlu0 %505
    %507 = vrot.lane.b32.xlu0 %v323, 1
    %v508 = vpop.permute.xlu0 %507
    %vm509 = vcmp.lt.s32.totalorder %v341, 1
    %v510 = vsel %vm509, %v502, %v506
    %v511 = vsel %vm509, %v504, %v508
    %v512 = vsel %vm509, %v498, %v502
    %v513 = vsel %vm509, %v500, %v504
    %v514 = vsel %vm509, %v494, %v498
    %v515 = vsel %vm509, %v496, %v500
    %v516 = vsel %vm509, %v506, %v494
    %v517 = vsel %vm509, %v508, %v496
    %s518 = scalar_lea.vmem [#allocation2], 3
    %v519 = vld [vmem:[%s518] ss:$8 sm:$0xf]
    %v521 = vlaneseq
    %v522 = vshrl.u32 %v521, 7
    %v523 = vsub.s32 0, %v522
    %v524 = vrot.slane %v519, %v523
    %v525 = vlaneseq
    %v526 = vshrl.u32 %v525, 7
    %v527 = vsub.s32 1, %v526
    %v528 = vrot.slane %v519, %v527
    %v529 = vlaneseq
    %v530 = vshrl.u32 %v529, 7
    %v531 = vsub.s32 2, %v530
    %v532 = vrot.slane %v519, %v531
    %v533 = vlaneseq
    %v534 = vshrl.u32 %v533, 7
    %v535 = vsub.s32 3, %v534
    %v536 = vrot.slane %v519, %v535
    %v541 = vmul.f32 %v516, %v524
    %v542 = vmul.f32 %v514, %v528
    %v543 = vmul.f32 %v512, %v532
    %v544 = vmul.f32 %v510, %v536
    %v545 = vmul.f32 %v517, %v524
    %v546 = vmul.f32 %v515, %v528
    %v547 = vmul.f32 %v513, %v532
    %v548 = vmul.f32 %v511, %v536
    %549 = vrot.lane.b32.xlu0 %v316, 127
    %v550 = vpop.permute.xlu0 %549
    %551 = vrot.lane.b32.xlu0 %v320, 127
    %v552 = vpop.permute.xlu0 %551
    %553 = vrot.lane.b32.xlu0 %v317, 127
    %v554 = vpop.permute.xlu0 %553
    %555 = vrot.lane.b32.xlu0 %v321, 127
    %v556 = vpop.permute.xlu0 %555
    %557 = vrot.lane.b32.xlu0 %v318, 127
    %v558 = vpop.permute.xlu0 %557
    %559 = vrot.lane.b32.xlu0 %v322, 127
    %v560 = vpop.permute.xlu0 %559
    %561 = vrot.lane.b32.xlu0 %v319, 127
    %v562 = vpop.permute.xlu0 %561
    %563 = vrot.lane.b32.xlu0 %v323, 127
    %v564 = vpop.permute.xlu0 %563
    %vm565 = vcmp.lt.s32.totalorder %v341, 127
    %v566 = vsel %vm565, %v558, %v562
    %v567 = vsel %vm565, %v560, %v564
    %v568 = vsel %vm565, %v554, %v558
    %v569 = vsel %vm565, %v556, %v560
    %v570 = vsel %vm565, %v550, %v554
    %v571 = vsel %vm565, %v552, %v556
    %v572 = vsel %vm565, %v562, %v550
    %v573 = vsel %vm565, %v564, %v552
    %s574 = scalar_lea.vmem [#allocation2], 5
    %v575 = vld [vmem:[%s574] ss:$8 sm:$0xf]
    %v577 = vlaneseq
    %v578 = vshrl.u32 %v577, 7
    %v579 = vsub.s32 0, %v578
    %v580 = vrot.slane %v575, %v579
    %v581 = vlaneseq
    %v582 = vshrl.u32 %v581, 7
    %v583 = vsub.s32 1, %v582
    %v584 = vrot.slane %v575, %v583
    %v585 = vlaneseq
    %v586 = vshrl.u32 %v585, 7
    %v587 = vsub.s32 2, %v586
    %v588 = vrot.slane %v575, %v587
    %v589 = vlaneseq
    %v590 = vshrl.u32 %v589, 7
    %v591 = vsub.s32 3, %v590
    %v592 = vrot.slane %v575, %v591
    %v597 = vmul.f32 %v570, %v580
    %v598 = vmul.f32 %v568, %v584
    %v599 = vmul.f32 %v566, %v588
    %v600 = vmul.f32 %v572, %v592
    %v601 = vmul.f32 %v571, %v580
    %v602 = vmul.f32 %v569, %v584
    %v603 = vmul.f32 %v567, %v588
    %v604 = vmul.f32 %v573, %v592
    %605 = vrot.lane.b32.xlu0 %v316, 113
    %v606 = vpop.permute.xlu0 %605
    %607 = vrot.lane.b32.xlu0 %v320, 113
    %v608 = vpop.permute.xlu0 %607
    %609 = vrot.lane.b32.xlu0 %v317, 113
    %v610 = vpop.permute.xlu0 %609
    %611 = vrot.lane.b32.xlu0 %v321, 113
    %v612 = vpop.permute.xlu0 %611
    %613 = vrot.lane.b32.xlu0 %v318, 113
    %v614 = vpop.permute.xlu0 %613
    %615 = vrot.lane.b32.xlu0 %v322, 113
    %v616 = vpop.permute.xlu0 %615
    %617 = vrot.lane.b32.xlu0 %v319, 113
    %v618 = vpop.permute.xlu0 %617
    %619 = vrot.lane.b32.xlu0 %v323, 113
    %v620 = vpop.permute.xlu0 %619
    %vm621 = vcmp.lt.s32.totalorder %v341, 113
    %v622 = vsel %vm621, %v614, %v618
    %v623 = vsel %vm621, %v616, %v620
    %v624 = vsel %vm621, %v610, %v614
    %v625 = vsel %vm621, %v612, %v616
    %v626 = vsel %vm621, %v606, %v610
    %v627 = vsel %vm621, %v608, %v612
    %v628 = vsel %vm621, %v618, %v606
    %v629 = vsel %vm621, %v620, %v608
    %s630 = scalar_lea.vmem [#allocation2], 6
    %v631 = vld [vmem:[%s630] ss:$8 sm:$0xf]
    %v633 = vlaneseq
    %v634 = vshrl.u32 %v633, 7
    %v635 = vsub.s32 0, %v634
    %v636 = vrot.slane %v631, %v635
    %v637 = vlaneseq
    %v638 = vshrl.u32 %v637, 7
    %v639 = vsub.s32 1, %v638
    %v640 = vrot.slane %v631, %v639
    %v641 = vlaneseq
    %v642 = vshrl.u32 %v641, 7
    %v643 = vsub.s32 2, %v642
    %v644 = vrot.slane %v631, %v643
    %v645 = vlaneseq
    %v646 = vshrl.u32 %v645, 7
    %v647 = vsub.s32 3, %v646
    %v648 = vrot.slane %v631, %v647
    %v653 = vmul.f32 %v626, %v636
    %v654 = vmul.f32 %v624, %v640
    %v655 = vmul.f32 %v622, %v644
    %v656 = vmul.f32 %v628, %v648
    %v657 = vmul.f32 %v627, %v636
    %v658 = vmul.f32 %v625, %v640
    %v659 = vmul.f32 %v623, %v644
    %v660 = vmul.f32 %v629, %v648
    %661 = vrot.lane.b32.xlu0 %v316, 112
    %v662 = vpop.permute.xlu0 %661
    %663 = vrot.lane.b32.xlu0 %v320, 112
    %v664 = vpop.permute.xlu0 %663
    %665 = vrot.lane.b32.xlu0 %v317, 112
    %v666 = vpop.permute.xlu0 %665
    %667 = vrot.lane.b32.xlu0 %v321, 112
    %v668 = vpop.permute.xlu0 %667
    %669 = vrot.lane.b32.xlu0 %v318, 112
    %v670 = vpop.permute.xlu0 %669
    %671 = vrot.lane.b32.xlu0 %v322, 112
    %v672 = vpop.permute.xlu0 %671
    %673 = vrot.lane.b32.xlu0 %v319, 112
    %v674 = vpop.permute.xlu0 %673
    %675 = vrot.lane.b32.xlu0 %v323, 112
    %v676 = vpop.permute.xlu0 %675
    %vm677 = vcmp.lt.s32.totalorder %v341, 112
    %v678 = vsel %vm677, %v670, %v674
    %v679 = vsel %vm677, %v672, %v676
    %v680 = vsel %vm677, %v666, %v670
    %v681 = vsel %vm677, %v668, %v672
    %v682 = vsel %vm677, %v662, %v666
    %v683 = vsel %vm677, %v664, %v668
    %v684 = vsel %vm677, %v674, %v662
    %v685 = vsel %vm677, %v676, %v664
    %s686 = scalar_lea.vmem [#allocation2], 7
    %v687 = vld [vmem:[%s686] ss:$8 sm:$0xf]
    %v689 = vlaneseq
    %v690 = vshrl.u32 %v689, 7
    %v691 = vsub.s32 0, %v690
    %v692 = vrot.slane %v687, %v691
    %v693 = vlaneseq
    %v694 = vshrl.u32 %v693, 7
    %v695 = vsub.s32 1, %v694
    %v696 = vrot.slane %v687, %v695
    %v697 = vlaneseq
    %v698 = vshrl.u32 %v697, 7
    %v699 = vsub.s32 2, %v698
    %v700 = vrot.slane %v687, %v699
    %v701 = vlaneseq
    %v702 = vshrl.u32 %v701, 7
    %v703 = vsub.s32 3, %v702
    %v704 = vrot.slane %v687, %v703
    %v709 = vmul.f32 %v682, %v692
    %v710 = vmul.f32 %v680, %v696
    %v711 = vmul.f32 %v678, %v700
    %v712 = vmul.f32 %v684, %v704
    %v713 = vmul.f32 %v683, %v692
    %v714 = vmul.f32 %v681, %v696
    %v715 = vmul.f32 %v679, %v700
    %v716 = vmul.f32 %v685, %v704
    %717 = vrot.lane.b32.xlu0 %v316, 111
    %v718 = vpop.permute.xlu0 %717
    %719 = vrot.lane.b32.xlu0 %v320, 111
    %v720 = vpop.permute.xlu0 %719
    %721 = vrot.lane.b32.xlu0 %v317, 111
    %v722 = vpop.permute.xlu0 %721
    %723 = vrot.lane.b32.xlu0 %v321, 111
    %v724 = vpop.permute.xlu0 %723
    %725 = vrot.lane.b32.xlu0 %v318, 111
    %v726 = vpop.permute.xlu0 %725
    %727 = vrot.lane.b32.xlu0 %v322, 111
    %v728 = vpop.permute.xlu0 %727
    %729 = vrot.lane.b32.xlu0 %v319, 111
    %v730 = vpop.permute.xlu0 %729
    %731 = vrot.lane.b32.xlu0 %v323, 111
    %v732 = vpop.permute.xlu0 %731
    %vm733 = vcmp.lt.s32.totalorder %v341, 111
    %v734 = vsel %vm733, %v726, %v730
    %v735 = vsel %vm733, %v728, %v732
    %v736 = vsel %vm733, %v722, %v726
    %v737 = vsel %vm733, %v724, %v728
    %v738 = vsel %vm733, %v718, %v722
    %v739 = vsel %vm733, %v720, %v724
    %v740 = vsel %vm733, %v730, %v718
    %v741 = vsel %vm733, %v732, %v720
    %s742 = scalar_lea.vmem [#allocation2], 32
    %v743 = vld [vmem:[%s742] ss:$8 sm:$0xf]
    %v745 = vlaneseq
    %v746 = vshrl.u32 %v745, 7
    %v747 = vsub.s32 0, %v746
    %v748 = vrot.slane %v743, %v747
    %v749 = vlaneseq
    %v750 = vshrl.u32 %v749, 7
    %v751 = vsub.s32 1, %v750
    %v752 = vrot.slane %v743, %v751
    %v753 = vlaneseq
    %v754 = vshrl.u32 %v753, 7
    %v755 = vsub.s32 2, %v754
    %v756 = vrot.slane %v743, %v755
    %v757 = vlaneseq
    %v758 = vshrl.u32 %v757, 7
    %v759 = vsub.s32 3, %v758
    %v760 = vrot.slane %v743, %v759
    %v765 = vmul.f32 %v738, %v748
    %v766 = vmul.f32 %v736, %v752
    %v767 = vmul.f32 %v734, %v756
    %v768 = vmul.f32 %v740, %v760
    %v769 = vmul.f32 %v739, %v748
    %v770 = vmul.f32 %v737, %v752
    %v771 = vmul.f32 %v735, %v756
    %v772 = vmul.f32 %v741, %v760
    %v773 = vld [vmem:[%s3] sm:$0xff]
    %v774 = vld [vmem:[%s3 + $0x8] sm:$0xff]
    %v775 = vld [vmem:[%s3 + $0x10] sm:$0xff]
    %v776 = vld [vmem:[%s3 + $0x18] sm:$0xff]
    %v777 = vld [vmem:[%s3 + $0x20] sm:$0xff]
    %v778 = vld [vmem:[%s3 + $0x28] sm:$0xff]
    %v779 = vld [vmem:[%s3 + $0x30] sm:$0xff]
    %v780 = vld [vmem:[%s3 + $0x38] sm:$0xff]
    %v781 = vld [vmem:[%s4] sm:$0xff]
    %v782 = vld [vmem:[%s4 + $0x8] sm:$0xff]
    %v783 = vld [vmem:[%s4 + $0x10] sm:$0xff]
    %v784 = vld [vmem:[%s4 + $0x18] sm:$0xff]
    %786 = vset.pattern.permute.xlu0 0
    %787 = vperm.xlu0 %786, %v781
    %v788 = vpop.permute.xlu0 %787
    %791 = vset.pattern.permute.xlu0 0
    %792 = vperm.xlu0 %791, %v782
    %v793 = vpop.permute.xlu0 %792
    %796 = vset.pattern.permute.xlu0 0
    %797 = vperm.xlu0 %796, %v783
    %v798 = vpop.permute.xlu0 %797
    %801 = vset.pattern.permute.xlu0 0
    %802 = vperm.xlu0 %801, %v784
    %v803 = vpop.permute.xlu0 %802
    %vm805 = vcmask 130048
    %v807 = vsel %vm805, %v774, 0
    %v810 = vsel %vm805, %v776, 0
    %v813 = vsel %vm805, %v778, 0
    %v816 = vsel %vm805, %v780, 0
    %818 = vmatprep.subr.mxu0 %v374
    %819 = vmatpush1.msra.mxu0 %v373
    %820 = vmatprep.subr.mxu0 %v378
    %821 = vmatpush1.msra.mxu0 %v377
    %822 = vmatprep.subr.mxu0 %v430
    %823 = vmatpush1.msra.mxu0 %v429
    %824 = vmatprep.subr.mxu0 %v434
    %825 = vmatpush1.msra.mxu0 %v433
    %826 = vmatprep.subr.mxu0 %v486
    %827 = vmatpush1.msra.mxu0 %v485
    %828 = vmatprep.subr.mxu0 %v490
    %829 = vmatpush1.msra.mxu0 %v489
    %830 = vmatprep.subr.mxu0 %v542
    %831 = vmatpush1.msra.mxu0 %v541
    %832 = vmatprep.subr.mxu0 %v546
    %833 = vmatpush1.msra.mxu0 %v545
    %834 = vmatprep.subr.mxu0 %v317
    %835 = vmatpush1.msra.mxu0 %v316
    %836 = vmatprep.subr.mxu0 %v321
    %837 = vmatpush1.msra.mxu0 %v320
    %838 = vmatprep.subr.mxu0 %v598
    %839 = vmatpush1.msra.mxu0 %v597
    %840 = vmatprep.subr.mxu0 %v602
    %841 = vmatpush1.msra.mxu0 %v601
    %842 = vmatprep.subr.mxu0 %v654
    %843 = vmatpush1.msra.mxu0 %v653
    %844 = vmatprep.subr.mxu0 %v658
    %845 = vmatpush1.msra.mxu0 %v657
    %846 = vmatprep.subr.mxu0 %v710
    %847 = vmatpush1.msra.mxu0 %v709
    %848 = vmatprep.subr.mxu0 %v714
    %849 = vmatpush1.msra.mxu0 %v713
    %850 = vmatprep.subr.mxu0 %v766
    %851 = vmatpush1.msra.mxu0 %v765
    %852 = vmatprep.subr.mxu0 %v770
    %853 = vmatpush1.msra.mxu0 %v769
    %854 = vmatprep.subr.mxu0 0.0
    %855 = vmatpush1.msra.mxu0 0.0
    %856 = vmatprep.subr.mxu0 0.0
    %857 = vmatpush1.msra.mxu0 0.0
    %858 = vmatprep.subr.mxu0 0.0
    %859 = vmatpush1.msra.mxu0 0.0
    %860 = vmatprep.subr.mxu0 0.0
    %861 = vmatpush1.msra.mxu0 0.0
    %862 = vmatprep.subr.mxu0 0.0
    %863 = vmatpush1.msra.mxu0 0.0
    %864 = vmatprep.subr.mxu0 0.0
    %865 = vmatpush1.msra.mxu0 0.0
    %866 = vmatprep.subr.mxu0 0.0
    %867 = vmatpush1.msra.mxu0 0.0
    %868 = vmatprep.subr.mxu0 0.0
    %869 = vmatpush1.msra.mxu0 0.0
    %870 = vmatprep.subr.mxu0 0.0
    %871 = vmatpush1.msra.mxu0 0.0
    %872 = vmatprep.subr.mxu0 0.0
    %873 = vmatpush1.msra.mxu0 0.0
    %874 = vmatprep.subr.mxu0 0.0
    %875 = vmatpush1.msra.mxu0 0.0
    %876 = vmatprep.subr.mxu0 0.0
    %877 = vmatpush1.msra.mxu0 0.0
    %878 = vmatprep.subr.mxu0 0.0
    %879 = vmatpush1.msra.mxu0 0.0
    %880 = vmatprep.subr.mxu0 0.0
    %881 = vmatpush1.msra.mxu0 0.0
    %882 = vmatprep.mubr.f32.mxu0 %v807
    %883 = vmatmul.mubr.f32.gmra.mrb[0].mxu0 %v773
    %v884 = vpop.f32.mrb[0].mxu0
    %v885 = vadd.f32 %v788, %v884
    %v886 = vpop.f32.mrb[0].mxu0
    %v887 = vadd.f32 %v788, %v886
    %888 = vmatprep.mubr.f32.mxu0 %v810
    %889 = vmatmul.mubr.f32.gmra.mrb[0].mxu0 %v775
    %v890 = vpop.f32.mrb[0].mxu0
    %v891 = vadd.f32 %v793, %v890
    %v892 = vpop.f32.mrb[0].mxu0
    %v893 = vadd.f32 %v793, %v892
    %894 = vmatprep.mubr.f32.mxu0 %v813
    %895 = vmatmul.mubr.f32.gmra.mrb[0].mxu0 %v777
    %v896 = vpop.f32.mrb[0].mxu0
    %v897 = vadd.f32 %v798, %v896
    %v898 = vpop.f32.mrb[0].mxu0
    %v899 = vadd.f32 %v798, %v898
    %900 = vmatprep.mubr.f32.mxu0 %v816
    %901 = vmatmul.mubr.f32.gmra.mrb[0].mxu0 %v779
    %v902 = vpop.f32.mrb[0].mxu0
    %v903 = vadd.f32 %v803, %v902
    %v904 = vpop.f32.mrb[0].mxu0
    %v905 = vadd.f32 %v803, %v904
    %906 = vdwg.mxu0
    %907 = vmatprep.subr.mxu0 %v376
    %908 = vmatpush1.msra.mxu0 %v375
    %909 = vmatprep.subr.mxu0 %v380
    %910 = vmatpush1.msra.mxu0 %v379
    %911 = vmatprep.subr.mxu0 %v432
    %912 = vmatpush1.msra.mxu0 %v431
    %913 = vmatprep.subr.mxu0 %v436
    %914 = vmatpush1.msra.mxu0 %v435
    %915 = vmatprep.subr.mxu0 %v488
    %916 = vmatpush1.msra.mxu0 %v487
    %917 = vmatprep.subr.mxu0 %v492
    %918 = vmatpush1.msra.mxu0 %v491
    %919 = vmatprep.subr.mxu0 %v544
    %920 = vmatpush1.msra.mxu0 %v543
    %921 = vmatprep.subr.mxu0 %v548
    %922 = vmatpush1.msra.mxu0 %v547
    %923 = vmatprep.subr.mxu0 %v319
    %924 = vmatpush1.msra.mxu0 %v318
    %925 = vmatprep.subr.mxu0 %v323
    %926 = vmatpush1.msra.mxu0 %v322
    %927 = vmatprep.subr.mxu0 %v600
    %928 = vmatpush1.msra.mxu0 %v599
    %929 = vmatprep.subr.mxu0 %v604
    %930 = vmatpush1.msra.mxu0 %v603
    %931 = vmatprep.subr.mxu0 %v656
    %932 = vmatpush1.msra.mxu0 %v655
    %933 = vmatprep.subr.mxu0 %v660
    %934 = vmatpush1.msra.mxu0 %v659
    %935 = vmatprep.subr.mxu0 %v712
    %936 = vmatpush1.msra.mxu0 %v711
    %937 = vmatprep.subr.mxu0 %v716
    %938 = vmatpush1.msra.mxu0 %v715
    %939 = vmatprep.subr.mxu0 %v768
    %940 = vmatpush1.msra.mxu0 %v767
    %941 = vmatprep.subr.mxu0 %v772
    %942 = vmatpush1.msra.mxu0 %v771
    %943 = vmatprep.subr.mxu0 0.0
    %944 = vmatpush1.msra.mxu0 0.0
    %945 = vmatprep.subr.mxu0 0.0
    %946 = vmatpush1.msra.mxu0 0.0
    %947 = vmatprep.subr.mxu0 0.0
    %948 = vmatpush1.msra.mxu0 0.0
    %949 = vmatprep.subr.mxu0 0.0
    %950 = vmatpush1.msra.mxu0 0.0
    %951 = vmatprep.subr.mxu0 0.0
    %952 = vmatpush1.msra.mxu0 0.0
    %953 = vmatprep.subr.mxu0 0.0
    %954 = vmatpush1.msra.mxu0 0.0
    %955 = vmatprep.subr.mxu0 0.0
    %956 = vmatpush1.msra.mxu0 0.0
    %957 = vmatprep.subr.mxu0 0.0
    %958 = vmatpush1.msra.mxu0 0.0
    %959 = vmatprep.subr.mxu0 0.0
    %960 = vmatpush1.msra.mxu0 0.0
    %961 = vmatprep.subr.mxu0 0.0
    %962 = vmatpush1.msra.mxu0 0.0
    %963 = vmatprep.subr.mxu0 0.0
    %964 = vmatpush1.msra.mxu0 0.0
    %965 = vmatprep.subr.mxu0 0.0
    %966 = vmatpush1.msra.mxu0 0.0
    %967 = vmatprep.subr.mxu0 0.0
    %968 = vmatpush1.msra.mxu0 0.0
    %969 = vmatprep.subr.mxu0 0.0
    %970 = vmatpush1.msra.mxu0 0.0
    %971 = vmatprep.mubr.f32.mxu0 %v807
    %972 = vmatmul.mubr.f32.gmra.mrb[0].mxu0 %v773
    %v973 = vpop.f32.mrb[0].mxu0
    %v974 = vadd.f32 %v788, %v973
    %v975 = vpop.f32.mrb[0].mxu0
    %v976 = vadd.f32 %v788, %v975
    %977 = vmatprep.mubr.f32.mxu0 %v810
    %978 = vmatmul.mubr.f32.gmra.mrb[0].mxu0 %v775
    %v979 = vpop.f32.mrb[0].mxu0
    %v980 = vadd.f32 %v793, %v979
    %v981 = vpop.f32.mrb[0].mxu0
    %v982 = vadd.f32 %v793, %v981
    %983 = vmatprep.mubr.f32.mxu0 %v813
    %984 = vmatmul.mubr.f32.gmra.mrb[0].mxu0 %v777
    %v985 = vpop.f32.mrb[0].mxu0
    %v986 = vadd.f32 %v798, %v985
    %v987 = vpop.f32.mrb[0].mxu0
    %v988 = vadd.f32 %v798, %v987
    %989 = vmatprep.mubr.f32.mxu0 %v816
    %990 = vmatmul.mubr.f32.gmra.mrb[0].mxu0 %v779
    %v991 = vpop.f32.mrb[0].mxu0
    %v992 = vadd.f32 %v803, %v991
    %v993 = vpop.f32.mrb[0].mxu0
    %v994 = vadd.f32 %v803, %v993
    %995 = vdwg.mxu0
    %v996 = vld [vmem:[#allocation5] sm:$0xff]
    %v997 = vld [vmem:[#allocation5 + $0x8] sm:$0xff]
    %v998 = vld [vmem:[#allocation5 + $0x10] sm:$0xff]
    %v999 = vld [vmem:[#allocation5 + $0x18] sm:$0xff]
    %v1000 = vld [vmem:[#allocation5 + $0x20] sm:$0xff]
    %v1001 = vld [vmem:[#allocation5 + $0x28] sm:$0xff]
    %v1002 = vld [vmem:[#allocation5 + $0x30] sm:$0xff]
    %v1003 = vld [vmem:[#allocation5 + $0x38] sm:$0xff]
    %v1004 = vld [vmem:[#allocation5 + $0x40] sm:$0xff]
    %v1005 = vld [vmem:[#allocation5 + $0x48] sm:$0xff]
    %v1006 = vld [vmem:[#allocation5 + $0x50] sm:$0xff]
    %v1007 = vld [vmem:[#allocation5 + $0x58] sm:$0xff]
    %v1008 = vld [vmem:[#allocation5 + $0x60] sm:$0xff]
    %v1009 = vld [vmem:[#allocation5 + $0x68] sm:$0xff]
    %v1010 = vld [vmem:[#allocation5 + $0x70] sm:$0xff]
    %v1011 = vld [vmem:[#allocation5 + $0x78] sm:$0xff]
    %v1012 = vadd.f32 %v885, %v996
    %v1013 = vadd.f32 %v887, %v997
    %v1014 = vadd.f32 %v974, %v998
    %v1015 = vadd.f32 %v976, %v999
    %v1016 = vadd.f32 %v891, %v1000
    %v1017 = vadd.f32 %v893, %v1001
    %v1018 = vadd.f32 %v980, %v1002
    %v1019 = vadd.f32 %v982, %v1003
    %v1020 = vadd.f32 %v897, %v1004
    %v1021 = vadd.f32 %v899, %v1005
    %v1022 = vadd.f32 %v986, %v1006
    %v1023 = vadd.f32 %v988, %v1007
    %v1024 = vadd.f32 %v903, %v1008
    %v1025 = vadd.f32 %v905, %v1009
    %v1026 = vadd.f32 %v992, %v1010
    %v1027 = vadd.f32 %v994, %v1011
    %v1028 = vmax.f32 %v1012, 0.0
    %v1029 = vmax.f32 %v1013, 0.0
    %v1030 = vmax.f32 %v1014, 0.0
    %v1031 = vmax.f32 %v1015, 0.0
    %v1032 = vmax.f32 %v1016, 0.0
    %v1033 = vmax.f32 %v1017, 0.0
    %v1034 = vmax.f32 %v1018, 0.0
    %v1035 = vmax.f32 %v1019, 0.0
    %v1036 = vmax.f32 %v1020, 0.0
    %v1037 = vmax.f32 %v1021, 0.0
    %v1038 = vmax.f32 %v1022, 0.0
    %v1039 = vmax.f32 %v1023, 0.0
    %v1040 = vmax.f32 %v1024, 0.0
    %v1041 = vmax.f32 %v1025, 0.0
    %v1042 = vmax.f32 %v1026, 0.0
    %v1043 = vmax.f32 %v1027, 0.0
    %1044 = vst [vmem:[#allocation5] sm:$0xff] %v1028
    %1045 = vst [vmem:[#allocation5 + $0x8] sm:$0xff] %v1029
    %1046 = vst [vmem:[#allocation5 + $0x10] sm:$0xff] %v1030
    %1047 = vst [vmem:[#allocation5 + $0x18] sm:$0xff] %v1031
    %1048 = vst [vmem:[#allocation5 + $0x20] sm:$0xff] %v1032
    %1049 = vst [vmem:[#allocation5 + $0x28] sm:$0xff] %v1033
    %1050 = vst [vmem:[#allocation5 + $0x30] sm:$0xff] %v1034
    %1051 = vst [vmem:[#allocation5 + $0x38] sm:$0xff] %v1035
    %1052 = vst [vmem:[#allocation5 + $0x40] sm:$0xff] %v1036
    %1053 = vst [vmem:[#allocation5 + $0x48] sm:$0xff] %v1037
    %1054 = vst [vmem:[#allocation5 + $0x50] sm:$0xff] %v1038
    %1055 = vst [vmem:[#allocation5 + $0x58] sm:$0xff] %v1039
    %1056 = vst [vmem:[#allocation5 + $0x60] sm:$0xff] %v1040
    %1057 = vst [vmem:[#allocation5 + $0x68] sm:$0xff] %v1041
    %1058 = vst [vmem:[#allocation5 + $0x70] sm:$0xff] %v1042
    %1059 = vst [vmem:[#allocation5 + $0x78] sm:$0xff] %v1043
    // Predicated region
    $region30: #{tpu_custom_call.1} parent=1 // pred_check
      _
    $region31: #{tpu_custom_call.1} parent=1 // pred_check_branch
      %1061 = sbr.rel (0) target = $region33
    $region32: #{tpu_custom_call.1} parent=1 // pred_region
      %s1063 = ssub.s32 2048, 2048
      %1064 = vsyncadd [#allocation4], %s1063
      %s1065 = sshll.u32 [#allocation5], 4
      %s1066 = int_to_ptr.vmem [resolvable:$true] %s1065
      %1071 = dma.vmem_to_hbm [thread:$0]  %s1066, 2048, %s6, [#allocation4], 512, 512, 32
    $region33: #{tpu_custom_call.1} parent=1 // pred_fallthru
      _
    // Predicated region
    $region34: #{tpu_custom_call.1} parent=1 // pred_check
      _
    $region35: #{tpu_custom_call.1} parent=1 // pred_check_branch
      %1073 = sbr.rel (0) target = $region37
    $region36: #{tpu_custom_call.1} parent=1 // pred_region
      %1074 = dma.done [#allocation4], 2048
    $region37: #{tpu_custom_call.1} parent=1 // pred_fallthru
      _
    %1075 = vsyncpa [#allocation3], 1
    %1076 = vsyncpa [#allocation4], 1

</llo_original>
